<compile_context>
chip_gen: v5e
topology: v5e:2x2
jax: 0.10.0
libtpu: 0.0.40
codegen_flags: <defaults>
</compile_context>

<pallas_src>
import functools

import jax
import jax.numpy as jnp
from jax import lax
from jax.experimental import pallas as pl
from jax.experimental.pallas import tpu as pltpu

LANES = 128
SUBLANES = 8
_MIN_SPLIT_COLS = 4      # only core-split a single K block if each half >= 4*128 cols


def _round_up(x, m):
    return ((x + m - 1) // m) * m


def _vmem_capacity_bytes():
    """Physical VMEM of the local chip; conservative (v7x-sized) fallback."""
    try:
        return int(pltpu.get_tpu_info().vmem_capacity_bytes)
    except Exception:
        return 64 * 1024 * 1024


def _vmem_budget(nc_pad):
    """Return (vmem_limit_bytes, per-feature-block byte budget) for this chip."""
    cap = _vmem_capacity_bytes()
    limit = min((cap * 3) // 4, 96 << 20)       # 96 MiB on v5e/v6e, 48 MiB on v7x
    gram_bytes = 2 * nc_pad * nc_pad * 4        # double-buffered f32 Gram block
    if gram_bytes > (limit * 3) // 4:
        # TODO(synk): tile the (nc_pad, nc_pad) Gram output for very large N*C.
        raise NotImplementedError(
            f"N*C={nc_pad}: Gram accumulator does not fit the "
            f"{limit >> 20} MiB VMEM budget")
    slack = 4 << 20                             # compiler-internal scratch headroom
    per_block = (limit - gram_bytes - slack) // 2   # double-buffered feature input
    per_block = max(512 << 10, min(per_block, 16 << 20, limit // 4))
    return limit, per_block


def _k_tiling(hw, nc_pad, itemsize, block_bytes):
    """Pick (hw_pad, tk, n_splits, steps_per_split) for the K = H*W reduction."""
    hw_pad = _round_up(hw, LANES)
    m = hw_pad // LANES                          # K extent in 128-lane columns
    budget_cols = max(1, block_bytes // (itemsize * nc_pad * LANES))
    # Largest tile (in 128-lane columns) that fits the budget AND divides m,
    # so hw is never padded beyond the next multiple of 128.
    d = 1
    for cand in range(1, min(m, budget_cols) + 1):
        if m % cand == 0:
            d = cand
    steps = m // d
    # If the whole K range fits in one block, halve it so the leading
    # "parallel" grid axis can use both TensorCores on v7x (free elsewhere).
    if steps == 1 and m % 2 == 0 and m >= 2 * _MIN_SPLIT_COLS:
        d, steps = m // 2, 2
    n_splits = 2 if (steps >= 2 and steps % 2 == 0) else 1
    return hw_pad, d * LANES, n_splits, steps // n_splits


def _partial_gram_kernel(f_ref, g_ref, *, precision):
    """Accumulate F_blk @ F_blk^T into the resident per-split Gram block."""
    @pl.when(pl.program_id(1) == 0)
    def _():
        g_ref[...] = jnp.zeros_like(g_ref)

    f = f_ref[...]                               # native dtype; MXU accumulates in f32
    g_ref[...] += lax.dot_general(
        f, f, (((1,), (1,)), ((), ())),          # F @ F^T, no explicit transpose
        preferred_element_type=jnp.float32,
        precision=precision)


def gram_matrix(x, precision=None):
    """Normalized Gram matrix of NCHW features: (F @ F^T) / (N*C*H*W)."""
    n, c, h, w = x.shape
    nc, hw = n * c, h * w
    itemsize = jnp.dtype(x.dtype).itemsize
    sub_mult = SUBLANES * max(1, 4 // itemsize)  # 8 (f32) / 16 (bf16) / 32 (int8)
    nc_pad = _round_up(nc, sub_mult)

    vmem_limit, block_bytes = _vmem_budget(nc_pad)
    hw_pad, tk, n_splits, steps = _k_tiling(hw, nc_pad, itemsize, block_bytes)

    f = x.reshape(nc, hw)                        # contiguous view, no HBM copy
    if (nc_pad, hw_pad) != (nc, hw):             # zero pad contributes 0 to F F^T
        f = jnp.pad(f, ((0, nc_pad - nc), (0, hw_pad - hw)))

    partial = pl.pallas_call(
        functools.partial(_partial_gram_kernel, precision=precision),
        out_shape=jax.ShapeDtypeStruct((n_splits, nc_pad, nc_pad), jnp.float32),
        grid=(n_splits, steps),
        in_specs=[pl.BlockSpec((nc_pad, tk), lambda s, k: (0, s * steps + k))],
        out_specs=pl.BlockSpec((None, nc_pad, nc_pad), lambda s, k: (s, 0, 0)),
        compiler_params=pltpu.CompilerParams(
            dimension_semantics=("parallel", "arbitrary"),
            vmem_limit_bytes=vmem_limit),
    )(f)

    # Tiny epilogue (sum over core-splits, crop padding, normalize) in JAX.
    g = jnp.sum(partial, axis=0)[:nc, :nc]
    return g * (1.0 / float(nc * hw))


class StyleLoss:
    """JAX/Pallas mirror of the PyTorch StyleLoss module."""

    def __init__(self, target_feature, precision=None):
        self._precision = precision
        self.target = gram_matrix(target_feature, precision=precision)
        self.loss = jnp.zeros((), jnp.float32)   # F.mse_loss(target, target) == 0

    def __call__(self, input_tensor):
        g = gram_matrix(input_tensor, precision=self._precision)
        d = g - self.target
        self.loss = jnp.mean(d * d)              # F.mse_loss(G, self.target)
        return input_tensor                      # identity pass-through


if __name__ == "__main__":
    key = jax.random.PRNGKey(0)
    k_tgt, k_in = jax.random.split(key)

    # Small NCHW feature maps consistent with the module's usage.
    target_feature = jax.random.normal(k_tgt, (2, 4, 16, 16), dtype=jnp.float32)
    x = jax.random.normal(k_in, (2, 4, 16, 16), dtype=jnp.float32)

    module = StyleLoss(target_feature)
    out = module(x)
    out = jax.block_until_ready(out)
    loss = jax.block_until_ready(module.loss)

    # Reference: plain-JAX gram matrix + MSE at matching (default) precision.
    def gram_ref(t):
        n, c, h, w = t.shape
        ff = t.reshape(n * c, h * w)
        return jnp.matmul(ff, ff.T) / (n * c * h * w)

    ref_target = gram_ref(target_feature)
    ref_loss = jnp.mean((gram_ref(x) - ref_target) ** 2)

    assert jnp.allclose(module.target, ref_target, rtol=2e-2, atol=1e-4), \
        "target Gram mismatch"
    assert jnp.allclose(loss, ref_loss, rtol=5e-2, atol=1e-6), (loss, ref_loss)
    assert jnp.array_equal(out, x), "forward must be identity on the input"

    print("KERNEL_OK")
</pallas_src>

<mosaic_0001>
module attributes {stable_mosaic.version = 11 : i64} {
  func.func @_partial_gram_kernel(%arg0: i32, %arg1: i32, %arg2: memref<8x256xf32, #tpu.memory_space<vmem>>, %arg3: memref<1x8x8xf32, #tpu.memory_space<vmem>>) attributes {dimension_semantics = [#tpu.dimension_semantics<parallel>, #tpu.dimension_semantics<arbitrary>], iteration_bounds = array<i64: 1, 1>, scalar_prefetch = 0 : i64, scratch_operands = 0 : i64, tpu.core_type = #tpu.core_type<tc>, window_params = [{transform_indices = @transform_0, window_bounds = array<i64: 8, 256>}, {transform_indices = @transform_1, window_bounds = array<i64: 1, 8, 8>}]} {
    %c0_i32 = arith.constant 0 : i32
    %0 = arith.cmpi eq, %arg1, %c0_i32 : i32
    %1 = arith.extui %0 : i1 to i32
    %c0_i32_0 = arith.constant 0 : i32
    %2 = arith.cmpi ne, %1, %c0_i32_0 : i32
    scf.if %2 {
      %cst_8 = arith.constant 0.000000e+00 : f32
      %11 = vector.broadcast %cst_8 : f32 to vector<8x8xf32>
      %c0_9 = arith.constant 0 : index
      %c0_10 = arith.constant 0 : index
      %c0_11 = arith.constant 0 : index
      %12 = vector.load %arg3[%c0_9, %c0_10, %c0_11] : memref<1x8x8xf32, #tpu.memory_space<vmem>>, vector<1x8x8xf32>
      %13 = vector.shape_cast %12 : vector<1x8x8xf32> to vector<8x8xf32>
      %14 = vector.shape_cast %11 : vector<8x8xf32> to vector<1x8x8xf32>
      tpu.vector_store %arg3[%c0_9, %c0_10, %c0_11], %14 {strides = array<i32>} : memref<1x8x8xf32, #tpu.memory_space<vmem>>, vector<1x8x8xf32>,
    } else {
    }
    %c0 = arith.constant 0 : index
    %c0_1 = arith.constant 0 : index
    %3 = vector.load %arg2[%c0, %c0_1] : memref<8x256xf32, #tpu.memory_space<vmem>>, vector<8x256xf32>
    %c0_2 = arith.constant 0 : index
    %c0_3 = arith.constant 0 : index
    %c0_4 = arith.constant 0 : index
    %4 = vector.load %arg3[%c0_2, %c0_3, %c0_4] : memref<1x8x8xf32, #tpu.memory_space<vmem>>, vector<1x8x8xf32>
    %5 = vector.shape_cast %4 : vector<1x8x8xf32> to vector<8x8xf32>
    %cst = arith.constant dense<0.000000e+00> : vector<8x8xf32>
    %6 = tpu.matmul %3, %3, %cst {dimension_numbers = #tpu.dot_dimension_numbers<[1], [1], [0], [0], [0, 0, 1, 0], [], []>} : vector<8x256xf32>, vector<8x256xf32>, vector<8x8xf32> -> vector<8x8xf32>
    %7 = arith.addf %5, %6 : vector<8x8xf32>
    %c0_5 = arith.constant 0 : index
    %c0_6 = arith.constant 0 : index
    %c0_7 = arith.constant 0 : index
    %8 = vector.load %arg3[%c0_5, %c0_6, %c0_7] : memref<1x8x8xf32, #tpu.memory_space<vmem>>, vector<1x8x8xf32>
    %9 = vector.shape_cast %8 : vector<1x8x8xf32> to vector<8x8xf32>
    %10 = vector.shape_cast %7 : vector<8x8xf32> to vector<1x8x8xf32>
    tpu.vector_store %arg3[%c0_5, %c0_6, %c0_7], %10 {strides = array<i32>} : memref<1x8x8xf32, #tpu.memory_space<vmem>>, vector<1x8x8xf32>,
    return
  }
  func.func @transform_0(%arg0: i32, %arg1: i32) -> (i32, i32) {
    %c1_i32 = arith.constant 1 : i32
    %0 = arith.muli %arg0, %c1_i32 : i32
    %1 = arith.addi %0, %arg1 : i32
    %c0_i32 = arith.constant 0 : i32
    %c0_i32_0 = arith.constant 0 : i32
    return %c0_i32, %1 : i32, i32
  }
  func.func @transform_1(%arg0: i32, %arg1: i32) -> (i32, i32, i32) {
    %c0_i32 = arith.constant 0 : i32
    %c0_i32_0 = arith.constant 0 : i32
    %c0_i32_1 = arith.constant 0 : i32
    return %arg0, %c0_i32, %c0_i32_0 : i32, i32, i32
  }
}

</mosaic_0001>

<llo_original>
// kernel: tpu_custom_call.1
$region0: #{tpu_custom_call.1}
  #allocation0 [shape = 'u32[]', space=smem, size = 0x4, offset = 0x4, fixed_abs, tag = 'smem constant byte address 0x4 - core index']
  #allocation1 [shape = 'u32[72,128]{1,0:T(1,128)}', space=vmem, size = 0x9000, scoped, tag = 'internal scratch']
  %s0 = inlined_call_operand.hbm [shape: f32[8,256], index: 0, kind: input, shape index: {}]
  %s1 = inlined_call_operand.hbm [shape: f32[1,8,8], index: 1, kind: output, shape index: {}]
  %s2 = sld [smem:[#allocation0]]
  $region22: #{tpu_custom_call.1} parent=0
    _
  %s4 = ssub.s32 1, %s2
  %s5 = scalar_select 0, %s4, %s2
  $region1: #{tpu_custom_call.1} parent=0
    #allocation2 [shape = 'u8[8192]{0}', space=vmem, size = 0x2000, scoped, tag = 'input window, operand 0, single buffered']
    #allocation3 [shape = 's32[1]{0}', space=sflag, size = 0x4, scoped, tag = 'scoped memory for tpu_custom_call.1']
    #allocation4 [shape = 's32[1]{0}', space=sflag, size = 0x4, scoped, tag = 'scoped memory for tpu_custom_call.1']
    #allocation5 [shape = 'u8[4096]{0}', space=vmem, size = 0x1000, scoped, tag = 'output window, operand 0, single buffered']
    %6 = vsyncpa [#allocation3], 0
    %7 = vsyncpa [#allocation4], 0
    // Predicated region
    $region2: #{tpu_custom_call.1} parent=1 // pred_check
      _
    $region3: #{tpu_custom_call.1} parent=1 // pred_check_branch
      %9 = sbr.rel (0) target = $region5
    $region4: #{tpu_custom_call.1} parent=1 // pred_region
      %s10 = sadd.s32 0, 0
      %s11 = smul.u32 2, %s10
      %13 = vsyncadd [#allocation3], 0
      %s14 = smul.addr %s11, 8
      %s15 = scalar_lea.hbm %s0, %s14
      %s17 = sshll.u32 %s15, 4
      %s18 = int_to_ptr.hbm [resolvable:$true] %s17
      %s19 = sshll.u32 [#allocation2], 4
      %s20 = int_to_ptr.vmem [resolvable:$true] %s19
      %22 = dma.hbm_to_vmem [thread:$0]  %s18, 256, %s20, [#allocation3]
    $region5: #{tpu_custom_call.1} parent=1 // pred_fallthru
      _
    // Predicated region
    $region6: #{tpu_custom_call.1} parent=1 // pred_check
      _
    $region7: #{tpu_custom_call.1} parent=1 // pred_check_branch
      %24 = sbr.rel (0) target = $region9
    $region8: #{tpu_custom_call.1} parent=1 // pred_region
      %26 = dma.done [#allocation3], 256
    $region9: #{tpu_custom_call.1} parent=1 // pred_fallthru
      _
    %s27 = sadd.s32 0, 0
    %s28 = smul.u32 2, %s27
    %p29 = scmp.eq.s32.totalorder 0, 0
    // Predicated region
    $region10: #{tpu_custom_call.1} parent=1 // pred_check
      %p30 = pneg %p29
    $region11: #{tpu_custom_call.1} parent=1 // pred_check_branch
      %32 = sbr.rel (%p30) target = $region13
    $region12: #{tpu_custom_call.1} parent=1 // pred_region
      %vm33 = vcmask 64512
      %34 = vst.msk [vmem:[#allocation5] sm:$0xff] %vm33, 0.0
    $region13: #{tpu_custom_call.1} parent=1 // pred_fallthru
      _
    %v35 = vld [vmem:[#allocation2] sm:$0xff]
    %v36 = vld [vmem:[#allocation2 + $0x8] sm:$0xff]
    %v37 = vld [vmem:[#allocation5] sm:$0xff]
    %38 = vmatpush.xpose.msra.mxu0 0.0
    %39 = vmatpush.xpose.msra.mxu0 0.0
    %40 = vmatpush.xpose.msra.mxu0 0.0
    %41 = vmatpush.xpose.msra.mxu0 0.0
    %42 = vmatpush.xpose.msra.mxu0 0.0
    %43 = vmatpush.xpose.msra.mxu0 0.0
    %44 = vmatpush.xpose.msra.mxu0 0.0
    %45 = vmatpush.xpose.msra.mxu0 0.0
    %46 = vmatpush.xpose.msra.mxu0 0.0
    %47 = vmatpush.xpose.msra.mxu0 0.0
    %48 = vmatpush.xpose.msra.mxu0 0.0
    %49 = vmatpush.xpose.msra.mxu0 0.0
    %50 = vmatpush.xpose.msra.mxu0 0.0
    %51 = vmatpush.xpose.msra.mxu0 0.0
    %52 = vmatpush.xpose.msra.mxu0 0.0
    %53 = vmatpush.xpose.msra.mxu0 %v35
    %54 = vmatmul.f32.gmra.mxu0 %v35
    %v55 = vpop.f32.mrf.mxu0
    %v56 = vadd.f32 0.0, %v55
    %57 = vdwg.mxu0
    %58 = vmatpush.xpose.msra.mxu0 0.0
    %59 = vmatpush.xpose.msra.mxu0 0.0
    %60 = vmatpush.xpose.msra.mxu0 0.0
    %61 = vmatpush.xpose.msra.mxu0 0.0
    %62 = vmatpush.xpose.msra.mxu0 0.0
    %63 = vmatpush.xpose.msra.mxu0 0.0
    %64 = vmatpush.xpose.msra.mxu0 0.0
    %65 = vmatpush.xpose.msra.mxu0 0.0
    %66 = vmatpush.xpose.msra.mxu0 0.0
    %67 = vmatpush.xpose.msra.mxu0 0.0
    %68 = vmatpush.xpose.msra.mxu0 0.0
    %69 = vmatpush.xpose.msra.mxu0 0.0
    %70 = vmatpush.xpose.msra.mxu0 0.0
    %71 = vmatpush.xpose.msra.mxu0 0.0
    %72 = vmatpush.xpose.msra.mxu0 0.0
    %73 = vmatpush.xpose.msra.mxu0 %v36
    %74 = vmatmul.f32.gmra.mxu0 %v36
    %v75 = vpop.f32.mrf.mxu0
    %v76 = vadd.f32 %v56, %v75
    %77 = vdwg.mxu0
    %v78 = vadd.f32 %v37, %v76
    %vm79 = vcmask 64512
    %80 = vst.msk [vmem:[#allocation5] sm:$0xff] %vm79, %v78
    // Predicated region
    $region14: #{tpu_custom_call.1} parent=1 // pred_check
      _
    $region15: #{tpu_custom_call.1} parent=1 // pred_check_branch
      %82 = sbr.rel (0) target = $region17
    $region16: #{tpu_custom_call.1} parent=1 // pred_region
      %84 = vsyncadd [#allocation4], 0
      %s86 = sshll.u32 [#allocation5], 4
      %s87 = int_to_ptr.vmem [resolvable:$true] %s86
      %s88 = sshll.u32 %s1, 4
      %s89 = int_to_ptr.hbm [resolvable:$true] %s88
      %91 = dma.vmem_to_hbm [thread:$0]  %s87, 128, %s89, [#allocation4]
    $region17: #{tpu_custom_call.1} parent=1 // pred_fallthru
      _
    // Predicated region
    $region18: #{tpu_custom_call.1} parent=1 // pred_check
      _
    $region19: #{tpu_custom_call.1} parent=1 // pred_check_branch
      %93 = sbr.rel (0) target = $region21
    $region20: #{tpu_custom_call.1} parent=1 // pred_region
      %95 = dma.done [#allocation4], 128
    $region21: #{tpu_custom_call.1} parent=1 // pred_fallthru
      _
    %96 = vsyncpa [#allocation3], 1
    %97 = vsyncpa [#allocation4], 1

</llo_original>
